<compile_context>
chip_gen: v5e
topology: v5e:2x2
jax: 0.10.0
libtpu: 0.0.40
codegen_flags: <defaults>
</compile_context>

<pallas_src>
import math

import jax
import jax.numpy as jnp
from jax import lax
from jax.experimental import pallas as pl
from jax.experimental.pallas import tpu as pltpu


def _make_mha_kernel(B, S, D, num_heads, has_mask):
    Dh = D // num_heads
    BS = B * S

    def kernel(*refs):
        if has_mask:
            x_ref, wqkv_ref, woT_ref, bias_ref, o_ref = refs
        else:
            x_ref, wqkv_ref, woT_ref, o_ref = refs
            bias_ref = None

        # One fused projection matmul: (3*B*S, D) @ (D, 3D).
        # Rows [0:BS)       x cols [0:D)    -> Q (already scaled by 1/sqrt(Dh))
        # Rows [BS:2BS)     x cols [D:2D)   -> K
        # Rows [2BS:3BS)    x cols [2D:3D)  -> V
        qkv = jnp.dot(x_ref[...], wqkv_ref[...], preferred_element_type=jnp.float32)

        for b in range(B):                      # static unroll: B*H tiny attention blocks
            rq = slice(b * S, (b + 1) * S)
            rk = slice(BS + b * S, BS + (b + 1) * S)
            rv = slice(2 * BS + b * S, 2 * BS + (b + 1) * S)
            out_b = None
            for h in range(num_heads):
                cq = slice(h * Dh, (h + 1) * Dh)
                ck = slice(D + h * Dh, D + (h + 1) * Dh)
                cv = slice(2 * D + h * Dh, 2 * D + (h + 1) * Dh)
                Qh = qkv[rq, cq]                # (S, Dh), pre-scaled
                Kh = qkv[rk, ck]                # (S, Dh)
                Vh = qkv[rv, cv]                # (S, Dh)

                # scores = Qh @ Kh.T without materializing a transpose.
                scores = lax.dot_general(
                    Qh, Kh, (((1,), (1,)), ((), ())),
                    preferred_element_type=jnp.float32)          # (S, S)
                if bias_ref is not None:
                    scores = scores + bias_ref[b, h]             # additive 0 / -1e30 bias

                probs = jax.nn.softmax(scores, axis=-1)
                # TODO(synk): training-mode Dropout(p=0.1) not implemented; forward == module.eval().
                ctx_h = jnp.dot(probs, Vh, preferred_element_type=jnp.float32)   # (S, Dh)

                # Accumulate directly through the output projection (no head concat):
                # out_b += ctx_h @ Wo.T[h*Dh:(h+1)*Dh, :]   (sublane-aligned weight slice)
                contrib = jnp.dot(ctx_h, woT_ref[h * Dh:(h + 1) * Dh, :],
                                  preferred_element_type=jnp.float32)            # (S, D)
                out_b = contrib if out_b is None else out_b + contrib

            o_ref[b * S:(b + 1) * S, :] = out_b.astype(o_ref.dtype)

    return kernel


def multihead_attention_pallas(q, k, v, wq, wk, wv, wo, num_heads, mask=None):
    """q, k, v: (B, S, D); weights in PyTorch (out, in) layout; mask: broadcastable to (B, H, S, S)."""
    B, S, D = q.shape
    assert D % num_heads == 0
    Dh = D // num_heads
    scale = 1.0 / math.sqrt(Dh)

    # Loop-invariant weight prep (done once in XLA, not per kernel step):
    # fold the attention scale into wq and stack the transposed projection weights.
    wqkv = jnp.concatenate([wq.T * scale, wk.T, wv.T], axis=1)        # (D, 3D)
    woT = wo.T                                                        # (D, D)

    # Row-stack the (possibly distinct) q/k/v inputs so the projections are one matmul.
    x_cat = jnp.concatenate(
        [q.reshape(B * S, D), k.reshape(B * S, D), v.reshape(B * S, D)], axis=0)  # (3*B*S, D)

    has_mask = mask is not None
    inputs = [x_cat, wqkv, woT]
    in_specs = [
        pl.BlockSpec((3 * B * S, D), lambda i: (0, 0)),
        pl.BlockSpec((D, 3 * D), lambda i: (0, 0)),
        pl.BlockSpec((D, D), lambda i: (0, 0)),
    ]
    if has_mask:
        # Precompute the mask as a finite additive bias (avoids -inf -> NaN on fully-masked rows).
        bias = jnp.where(mask == 0, jnp.float32(-1e30), jnp.float32(0.0))
        bias = jnp.broadcast_to(bias, (B, num_heads, S, S)).astype(jnp.float32)
        inputs.append(bias)
        in_specs.append(pl.BlockSpec((B, num_heads, S, S), lambda i: (0, 0, 0, 0)))

    kernel = _make_mha_kernel(B, S, D, num_heads, has_mask)

    out_flat = pl.pallas_call(
        kernel,
        out_shape=jax.ShapeDtypeStruct((B * S, D), q.dtype),
        grid=(1,),                                       # single grid step: no per-step overhead
        in_specs=in_specs,
        out_specs=pl.BlockSpec((B * S, D), lambda i: (0, 0)),
        compiler_params=pltpu.CompilerParams(dimension_semantics=("arbitrary",)),
    )(*inputs)
    return out_flat.reshape(B, S, D)


def multihead_attention_ref(q, k, v, wq, wk, wv, wo, num_heads, mask=None):
    """Pure-JAX reference mirroring the PyTorch module (dropout in eval mode)."""
    B, S, D = q.shape
    head_dim = D // num_heads

    def split(x):
        return x.reshape(B, S, num_heads, head_dim).transpose(0, 2, 1, 3)

    Q = split(q @ wq.T)
    K = split(k @ wk.T)
    V = split(v @ wv.T)
    scores = jnp.einsum("bhqd,bhkd->bhqk", Q, K) / math.sqrt(head_dim)
    if mask is not None:
        scores = jnp.where(mask == 0, -jnp.inf, scores)
    probs = jax.nn.softmax(scores, axis=-1)
    ctx = jnp.einsum("bhqk,bhkd->bhqd", probs, V)
    ctx = ctx.transpose(0, 2, 1, 3).reshape(B, S, D)
    return ctx @ wo.T


if __name__ == "__main__":
    B, S, d_model, num_heads = 2, 8, 32, 4

    key = jax.random.PRNGKey(0)
    kq, kk, kv, kwq, kwk, kwv, kwo = jax.random.split(key, 7)

    q = jax.random.normal(kq, (B, S, d_model), dtype=jnp.float32)
    k = jax.random.normal(kk, (B, S, d_model), dtype=jnp.float32)
    v = jax.random.normal(kv, (B, S, d_model), dtype=jnp.float32)

    # nn.Linear default init: U(-1/sqrt(in), 1/sqrt(in)), weight shape (out, in)
    bound = 1.0 / math.sqrt(d_model)
    init_w = lambda kk_: jax.random.uniform(
        kk_, (d_model, d_model), jnp.float32, -bound, bound)
    wq, wk, wv, wo = init_w(kwq), init_w(kwk), init_w(kwv), init_w(kwo)

    # --- no mask ---
    out = multihead_attention_pallas(q, k, v, wq, wk, wv, wo, num_heads)
    out = jax.block_until_ready(out)
    ref = multihead_attention_ref(q, k, v, wq, wk, wv, wo, num_heads)
    assert jnp.allclose(out, ref, atol=1e-4, rtol=1e-4), "mismatch (no mask)"

    # --- causal mask, broadcast to (B, H, S, S) ---
    causal = jnp.tril(jnp.ones((S, S), jnp.float32))
    mask = jnp.broadcast_to(causal, (B, num_heads, S, S))
    out_m = multihead_attention_pallas(q, k, v, wq, wk, wv, wo, num_heads, mask=mask)
    out_m = jax.block_until_ready(out_m)
    ref_m = multihead_attention_ref(q, k, v, wq, wk, wv, wo, num_heads, mask=mask)
    assert jnp.allclose(out_m, ref_m, atol=1e-4, rtol=1e-4), "mismatch (masked)"

    print("KERNEL_OK")
</pallas_src>

<mosaic_0001>
module attributes {stable_mosaic.version = 11 : i64} {
  func.func @kernel(%arg0: i32, %arg1: memref<48x32xf32, #tpu.memory_space<vmem>>, %arg2: memref<32x96xf32, #tpu.memory_space<vmem>>, %arg3: memref<32x32xf32, #tpu.memory_space<vmem>>, %arg4: memref<16x32xf32, #tpu.memory_space<vmem>>) attributes {dimension_semantics = [#tpu.dimension_semantics<arbitrary>], iteration_bounds = array<i64: 1>, scalar_prefetch = 0 : i64, scratch_operands = 0 : i64, tpu.core_type = #tpu.core_type<tc>, window_params = [{pipeline_mode = #tpu.pipeline_mode<synchronous>, transform_indices = @transform_0, window_bounds = array<i64: 48, 32>}, {pipeline_mode = #tpu.pipeline_mode<synchronous>, transform_indices = @transform_1, window_bounds = array<i64: 32, 96>}, {pipeline_mode = #tpu.pipeline_mode<synchronous>, transform_indices = @transform_2, window_bounds = array<i64: 32, 32>}, {pipeline_mode = #tpu.pipeline_mode<synchronous>, transform_indices = @transform_3, window_bounds = array<i64: 16, 32>}]} {
    %c0 = arith.constant 0 : index
    %c0_0 = arith.constant 0 : index
    %0 = vector.load %arg1[%c0, %c0_0] : memref<48x32xf32, #tpu.memory_space<vmem>>, vector<48x32xf32>
    %c0_1 = arith.constant 0 : index
    %c0_2 = arith.constant 0 : index
    %1 = vector.load %arg2[%c0_1, %c0_2] : memref<32x96xf32, #tpu.memory_space<vmem>>, vector<32x96xf32>
    %cst = arith.constant dense<0.000000e+00> : vector<48x96xf32>
    %2 = tpu.matmul %0, %1, %cst {dimension_numbers = #tpu.dot_dimension_numbers<[1], [0], [0], [1], [0, 0, 1, 1], [], []>} : vector<48x32xf32>, vector<32x96xf32>, vector<48x96xf32> -> vector<48x96xf32>
    %3 = vector.extract_strided_slice %2 {offsets = [0, 0], sizes = [8, 8], strides = [1, 1]} : vector<48x96xf32> to vector<8x8xf32>
    %4 = vector.extract_strided_slice %2 {offsets = [16, 32], sizes = [8, 8], strides = [1, 1]} : vector<48x96xf32> to vector<8x8xf32>
    %5 = vector.extract_strided_slice %2 {offsets = [32, 64], sizes = [8, 8], strides = [1, 1]} : vector<48x96xf32> to vector<8x8xf32>
    %cst_3 = arith.constant dense<0.000000e+00> : vector<8x8xf32>
    %6 = tpu.matmul %3, %4, %cst_3 {dimension_numbers = #tpu.dot_dimension_numbers<[1], [1], [0], [0], [0, 0, 1, 0], [], []>} : vector<8x8xf32>, vector<8x8xf32>, vector<8x8xf32> -> vector<8x8xf32>
    %cst_4 = arith.constant dense<0xFF800000> : vector<8xf32>
    %7 = vector.multi_reduction <maximumf>, %6, %cst_4 [1] : vector<8x8xf32> to vector<8xf32>
    %cst_5 = arith.constant 0xFF800000 : f32
    %8 = vector.broadcast %cst_5 : f32 to vector<8xf32>
    %9 = arith.maximumf %8, %7 : vector<8xf32>
    %10 = vector.shape_cast %9 : vector<8xf32> to vector<8x1xf32>
    %11 = vector.broadcast %10 : vector<8x1xf32> to vector<8x8xf32>
    %12 = arith.subf %6, %11 : vector<8x8xf32>
    %13 = math.exp %12 : vector<8x8xf32>
    %cst_6 = arith.constant dense<0.000000e+00> : vector<8xf32>
    %14 = vector.multi_reduction <add>, %13, %cst_6 [1] : vector<8x8xf32> to vector<8xf32>
    %15 = vector.shape_cast %14 : vector<8xf32> to vector<8x1xf32>
    %16 = vector.broadcast %15 : vector<8x1xf32> to vector<8x8xf32>
    %17 = arith.divf %13, %16 : vector<8x8xf32>
    %cst_7 = arith.constant dense<0.000000e+00> : vector<8x8xf32>
    %18 = tpu.matmul %17, %5, %cst_7 {dimension_numbers = #tpu.dot_dimension_numbers<[1], [0], [0], [1], [0, 0, 1, 1], [], []>} : vector<8x8xf32>, vector<8x8xf32>, vector<8x8xf32> -> vector<8x8xf32>
    %c0_8 = arith.constant 0 : index
    %c0_9 = arith.constant 0 : index
    %19 = vector.load %arg3[%c0_8, %c0_9] : memref<32x32xf32, #tpu.memory_space<vmem>>, vector<8x32xf32>
    %cst_10 = arith.constant dense<0.000000e+00> : vector<8x32xf32>
    %20 = tpu.matmul %18, %19, %cst_10 {dimension_numbers = #tpu.dot_dimension_numbers<[1], [0], [0], [1], [0, 0, 1, 1], [], []>} : vector<8x8xf32>, vector<8x32xf32>, vector<8x32xf32> -> vector<8x32xf32>
    %21 = vector.extract_strided_slice %2 {offsets = [0, 8], sizes = [8, 8], strides = [1, 1]} : vector<48x96xf32> to vector<8x8xf32>
    %22 = vector.extract_strided_slice %2 {offsets = [16, 40], sizes = [8, 8], strides = [1, 1]} : vector<48x96xf32> to vector<8x8xf32>
    %23 = vector.extract_strided_slice %2 {offsets = [32, 72], sizes = [8, 8], strides = [1, 1]} : vector<48x96xf32> to vector<8x8xf32>
    %cst_11 = arith.constant dense<0.000000e+00> : vector<8x8xf32>
    %24 = tpu.matmul %21, %22, %cst_11 {dimension_numbers = #tpu.dot_dimension_numbers<[1], [1], [0], [0], [0, 0, 1, 0], [], []>} : vector<8x8xf32>, vector<8x8xf32>, vector<8x8xf32> -> vector<8x8xf32>
    %cst_12 = arith.constant dense<0xFF800000> : vector<8xf32>
    %25 = vector.multi_reduction <maximumf>, %24, %cst_12 [1] : vector<8x8xf32> to vector<8xf32>
    %cst_13 = arith.constant 0xFF800000 : f32
    %26 = vector.broadcast %cst_13 : f32 to vector<8xf32>
    %27 = arith.maximumf %26, %25 : vector<8xf32>
    %28 = vector.shape_cast %27 : vector<8xf32> to vector<8x1xf32>
    %29 = vector.broadcast %28 : vector<8x1xf32> to vector<8x8xf32>
    %30 = arith.subf %24, %29 : vector<8x8xf32>
    %31 = math.exp %30 : vector<8x8xf32>
    %cst_14 = arith.constant dense<0.000000e+00> : vector<8xf32>
    %32 = vector.multi_reduction <add>, %31, %cst_14 [1] : vector<8x8xf32> to vector<8xf32>
    %33 = vector.shape_cast %32 : vector<8xf32> to vector<8x1xf32>
    %34 = vector.broadcast %33 : vector<8x1xf32> to vector<8x8xf32>
    %35 = arith.divf %31, %34 : vector<8x8xf32>
    %cst_15 = arith.constant dense<0.000000e+00> : vector<8x8xf32>
    %36 = tpu.matmul %35, %23, %cst_15 {dimension_numbers = #tpu.dot_dimension_numbers<[1], [0], [0], [1], [0, 0, 1, 1], [], []>} : vector<8x8xf32>, vector<8x8xf32>, vector<8x8xf32> -> vector<8x8xf32>
    %c8 = arith.constant 8 : index
    %c0_16 = arith.constant 0 : index
    %37 = vector.load %arg3[%c8, %c0_16] : memref<32x32xf32, #tpu.memory_space<vmem>>, vector<8x32xf32>
    %cst_17 = arith.constant dense<0.000000e+00> : vector<8x32xf32>
    %38 = tpu.matmul %36, %37, %cst_17 {dimension_numbers = #tpu.dot_dimension_numbers<[1], [0], [0], [1], [0, 0, 1, 1], [], []>} : vector<8x8xf32>, vector<8x32xf32>, vector<8x32xf32> -> vector<8x32xf32>
    %39 = arith.addf %20, %38 : vector<8x32xf32>
    %40 = vector.extract_strided_slice %2 {offsets = [0, 16], sizes = [8, 8], strides = [1, 1]} : vector<48x96xf32> to vector<8x8xf32>
    %41 = vector.extract_strided_slice %2 {offsets = [16, 48], sizes = [8, 8], strides = [1, 1]} : vector<48x96xf32> to vector<8x8xf32>
    %42 = vector.extract_strided_slice %2 {offsets = [32, 80], sizes = [8, 8], strides = [1, 1]} : vector<48x96xf32> to vector<8x8xf32>
    %cst_18 = arith.constant dense<0.000000e+00> : vector<8x8xf32>
    %43 = tpu.matmul %40, %41, %cst_18 {dimension_numbers = #tpu.dot_dimension_numbers<[1], [1], [0], [0], [0, 0, 1, 0], [], []>} : vector<8x8xf32>, vector<8x8xf32>, vector<8x8xf32> -> vector<8x8xf32>
    %cst_19 = arith.constant dense<0xFF800000> : vector<8xf32>
    %44 = vector.multi_reduction <maximumf>, %43, %cst_19 [1] : vector<8x8xf32> to vector<8xf32>
    %cst_20 = arith.constant 0xFF800000 : f32
    %45 = vector.broadcast %cst_20 : f32 to vector<8xf32>
    %46 = arith.maximumf %45, %44 : vector<8xf32>
    %47 = vector.shape_cast %46 : vector<8xf32> to vector<8x1xf32>
    %48 = vector.broadcast %47 : vector<8x1xf32> to vector<8x8xf32>
    %49 = arith.subf %43, %48 : vector<8x8xf32>
    %50 = math.exp %49 : vector<8x8xf32>
    %cst_21 = arith.constant dense<0.000000e+00> : vector<8xf32>
    %51 = vector.multi_reduction <add>, %50, %cst_21 [1] : vector<8x8xf32> to vector<8xf32>
    %52 = vector.shape_cast %51 : vector<8xf32> to vector<8x1xf32>
    %53 = vector.broadcast %52 : vector<8x1xf32> to vector<8x8xf32>
    %54 = arith.divf %50, %53 : vector<8x8xf32>
    %cst_22 = arith.constant dense<0.000000e+00> : vector<8x8xf32>
    %55 = tpu.matmul %54, %42, %cst_22 {dimension_numbers = #tpu.dot_dimension_numbers<[1], [0], [0], [1], [0, 0, 1, 1], [], []>} : vector<8x8xf32>, vector<8x8xf32>, vector<8x8xf32> -> vector<8x8xf32>
    %c16 = arith.constant 16 : index
    %c0_23 = arith.constant 0 : index
    %56 = vector.load %arg3[%c16, %c0_23] : memref<32x32xf32, #tpu.memory_space<vmem>>, vector<8x32xf32>
    %cst_24 = arith.constant dense<0.000000e+00> : vector<8x32xf32>
    %57 = tpu.matmul %55, %56, %cst_24 {dimension_numbers = #tpu.dot_dimension_numbers<[1], [0], [0], [1], [0, 0, 1, 1], [], []>} : vector<8x8xf32>, vector<8x32xf32>, vector<8x32xf32> -> vector<8x32xf32>
    %58 = arith.addf %39, %57 : vector<8x32xf32>
    %59 = vector.extract_strided_slice %2 {offsets = [0, 24], sizes = [8, 8], strides = [1, 1]} : vector<48x96xf32> to vector<8x8xf32>
    %60 = vector.extract_strided_slice %2 {offsets = [16, 56], sizes = [8, 8], strides = [1, 1]} : vector<48x96xf32> to vector<8x8xf32>
    %61 = vector.extract_strided_slice %2 {offsets = [32, 88], sizes = [8, 8], strides = [1, 1]} : vector<48x96xf32> to vector<8x8xf32>
    %cst_25 = arith.constant dense<0.000000e+00> : vector<8x8xf32>
    %62 = tpu.matmul %59, %60, %cst_25 {dimension_numbers = #tpu.dot_dimension_numbers<[1], [1], [0], [0], [0, 0, 1, 0], [], []>} : vector<8x8xf32>, vector<8x8xf32>, vector<8x8xf32> -> vector<8x8xf32>
    %cst_26 = arith.constant dense<0xFF800000> : vector<8xf32>
    %63 = vector.multi_reduction <maximumf>, %62, %cst_26 [1] : vector<8x8xf32> to vector<8xf32>
    %cst_27 = arith.constant 0xFF800000 : f32
    %64 = vector.broadcast %cst_27 : f32 to vector<8xf32>
    %65 = arith.maximumf %64, %63 : vector<8xf32>
    %66 = vector.shape_cast %65 : vector<8xf32> to vector<8x1xf32>
    %67 = vector.broadcast %66 : vector<8x1xf32> to vector<8x8xf32>
    %68 = arith.subf %62, %67 : vector<8x8xf32>
    %69 = math.exp %68 : vector<8x8xf32>
    %cst_28 = arith.constant dense<0.000000e+00> : vector<8xf32>
    %70 = vector.multi_reduction <add>, %69, %cst_28 [1] : vector<8x8xf32> to vector<8xf32>
    %71 = vector.shape_cast %70 : vector<8xf32> to vector<8x1xf32>
    %72 = vector.broadcast %71 : vector<8x1xf32> to vector<8x8xf32>
    %73 = arith.divf %69, %72 : vector<8x8xf32>
    %cst_29 = arith.constant dense<0.000000e+00> : vector<8x8xf32>
    %74 = tpu.matmul %73, %61, %cst_29 {dimension_numbers = #tpu.dot_dimension_numbers<[1], [0], [0], [1], [0, 0, 1, 1], [], []>} : vector<8x8xf32>, vector<8x8xf32>, vector<8x8xf32> -> vector<8x8xf32>
    %c24 = arith.constant 24 : index
    %c0_30 = arith.constant 0 : index
    %75 = vector.load %arg3[%c24, %c0_30] : memref<32x32xf32, #tpu.memory_space<vmem>>, vector<8x32xf32>
    %cst_31 = arith.constant dense<0.000000e+00> : vector<8x32xf32>
    %76 = tpu.matmul %74, %75, %cst_31 {dimension_numbers = #tpu.dot_dimension_numbers<[1], [0], [0], [1], [0, 0, 1, 1], [], []>} : vector<8x8xf32>, vector<8x32xf32>, vector<8x32xf32> -> vector<8x32xf32>
    %77 = arith.addf %58, %76 : vector<8x32xf32>
    %c0_32 = arith.constant 0 : index
    %c0_33 = arith.constant 0 : index
    %78 = vector.load %arg4[%c0_32, %c0_33] : memref<16x32xf32, #tpu.memory_space<vmem>>, vector<8x32xf32>
    tpu.vector_store %arg4[%c0_32, %c0_33], %77 {strides = array<i32>} : memref<16x32xf32, #tpu.memory_space<vmem>>, vector<8x32xf32>,
    %79 = vector.extract_strided_slice %2 {offsets = [8, 0], sizes = [8, 8], strides = [1, 1]} : vector<48x96xf32> to vector<8x8xf32>
    %80 = vector.extract_strided_slice %2 {offsets = [24, 32], sizes = [8, 8], strides = [1, 1]} : vector<48x96xf32> to vector<8x8xf32>
    %81 = vector.extract_strided_slice %2 {offsets = [40, 64], sizes = [8, 8], strides = [1, 1]} : vector<48x96xf32> to vector<8x8xf32>
    %cst_34 = arith.constant dense<0.000000e+00> : vector<8x8xf32>
    %82 = tpu.matmul %79, %80, %cst_34 {dimension_numbers = #tpu.dot_dimension_numbers<[1], [1], [0], [0], [0, 0, 1, 0], [], []>} : vector<8x8xf32>, vector<8x8xf32>, vector<8x8xf32> -> vector<8x8xf32>
    %cst_35 = arith.constant dense<0xFF800000> : vector<8xf32>
    %83 = vector.multi_reduction <maximumf>, %82, %cst_35 [1] : vector<8x8xf32> to vector<8xf32>
    %cst_36 = arith.constant 0xFF800000 : f32
    %84 = vector.broadcast %cst_36 : f32 to vector<8xf32>
    %85 = arith.maximumf %84, %83 : vector<8xf32>
    %86 = vector.shape_cast %85 : vector<8xf32> to vector<8x1xf32>
    %87 = vector.broadcast %86 : vector<8x1xf32> to vector<8x8xf32>
    %88 = arith.subf %82, %87 : vector<8x8xf32>
    %89 = math.exp %88 : vector<8x8xf32>
    %cst_37 = arith.constant dense<0.000000e+00> : vector<8xf32>
    %90 = vector.multi_reduction <add>, %89, %cst_37 [1] : vector<8x8xf32> to vector<8xf32>
    %91 = vector.shape_cast %90 : vector<8xf32> to vector<8x1xf32>
    %92 = vector.broadcast %91 : vector<8x1xf32> to vector<8x8xf32>
    %93 = arith.divf %89, %92 : vector<8x8xf32>
    %cst_38 = arith.constant dense<0.000000e+00> : vector<8x8xf32>
    %94 = tpu.matmul %93, %81, %cst_38 {dimension_numbers = #tpu.dot_dimension_numbers<[1], [0], [0], [1], [0, 0, 1, 1], [], []>} : vector<8x8xf32>, vector<8x8xf32>, vector<8x8xf32> -> vector<8x8xf32>
    %c0_39 = arith.constant 0 : index
    %c0_40 = arith.constant 0 : index
    %95 = vector.load %arg3[%c0_39, %c0_40] : memref<32x32xf32, #tpu.memory_space<vmem>>, vector<8x32xf32>
    %cst_41 = arith.constant dense<0.000000e+00> : vector<8x32xf32>
    %96 = tpu.matmul %94, %95, %cst_41 {dimension_numbers = #tpu.dot_dimension_numbers<[1], [0], [0], [1], [0, 0, 1, 1], [], []>} : vector<8x8xf32>, vector<8x32xf32>, vector<8x32xf32> -> vector<8x32xf32>
    %97 = vector.extract_strided_slice %2 {offsets = [8, 8], sizes = [8, 8], strides = [1, 1]} : vector<48x96xf32> to vector<8x8xf32>
    %98 = vector.extract_strided_slice %2 {offsets = [24, 40], sizes = [8, 8], strides = [1, 1]} : vector<48x96xf32> to vector<8x8xf32>
    %99 = vector.extract_strided_slice %2 {offsets = [40, 72], sizes = [8, 8], strides = [1, 1]} : vector<48x96xf32> to vector<8x8xf32>
    %cst_42 = arith.constant dense<0.000000e+00> : vector<8x8xf32>
    %100 = tpu.matmul %97, %98, %cst_42 {dimension_numbers = #tpu.dot_dimension_numbers<[1], [1], [0], [0], [0, 0, 1, 0], [], []>} : vector<8x8xf32>, vector<8x8xf32>, vector<8x8xf32> -> vector<8x8xf32>
    %cst_43 = arith.constant dense<0xFF800000> : vector<8xf32>
    %101 = vector.multi_reduction <maximumf>, %100, %cst_43 [1] : vector<8x8xf32> to vector<8xf32>
    %cst_44 = arith.constant 0xFF800000 : f32
    %102 = vector.broadcast %cst_44 : f32 to vector<8xf32>
    %103 = arith.maximumf %102, %101 : vector<8xf32>
    %104 = vector.shape_cast %103 : vector<8xf32> to vector<8x1xf32>
    %105 = vector.broadcast %104 : vector<8x1xf32> to vector<8x8xf32>
    %106 = arith.subf %100, %105 : vector<8x8xf32>
    %107 = math.exp %106 : vector<8x8xf32>
    %cst_45 = arith.constant dense<0.000000e+00> : vector<8xf32>
    %108 = vector.multi_reduction <add>, %107, %cst_45 [1] : vector<8x8xf32> to vector<8xf32>
    %109 = vector.shape_cast %108 : vector<8xf32> to vector<8x1xf32>
    %110 = vector.broadcast %109 : vector<8x1xf32> to vector<8x8xf32>
    %111 = arith.divf %107, %110 : vector<8x8xf32>
    %cst_46 = arith.constant dense<0.000000e+00> : vector<8x8xf32>
    %112 = tpu.matmul %111, %99, %cst_46 {dimension_numbers = #tpu.dot_dimension_numbers<[1], [0], [0], [1], [0, 0, 1, 1], [], []>} : vector<8x8xf32>, vector<8x8xf32>, vector<8x8xf32> -> vector<8x8xf32>
    %c8_47 = arith.constant 8 : index
    %c0_48 = arith.constant 0 : index
    %113 = vector.load %arg3[%c8_47, %c0_48] : memref<32x32xf32, #tpu.memory_space<vmem>>, vector<8x32xf32>
    %cst_49 = arith.constant dense<0.000000e+00> : vector<8x32xf32>
    %114 = tpu.matmul %112, %113, %cst_49 {dimension_numbers = #tpu.dot_dimension_numbers<[1], [0], [0], [1], [0, 0, 1, 1], [], []>} : vector<8x8xf32>, vector<8x32xf32>, vector<8x32xf32> -> vector<8x32xf32>
    %115 = arith.addf %96, %114 : vector<8x32xf32>
    %116 = vector.extract_strided_slice %2 {offsets = [8, 16], sizes = [8, 8], strides = [1, 1]} : vector<48x96xf32> to vector<8x8xf32>
    %117 = vector.extract_strided_slice %2 {offsets = [24, 48], sizes = [8, 8], strides = [1, 1]} : vector<48x96xf32> to vector<8x8xf32>
    %118 = vector.extract_strided_slice %2 {offsets = [40, 80], sizes = [8, 8], strides = [1, 1]} : vector<48x96xf32> to vector<8x8xf32>
    %cst_50 = arith.constant dense<0.000000e+00> : vector<8x8xf32>
    %119 = tpu.matmul %116, %117, %cst_50 {dimension_numbers = #tpu.dot_dimension_numbers<[1], [1], [0], [0], [0, 0, 1, 0], [], []>} : vector<8x8xf32>, vector<8x8xf32>, vector<8x8xf32> -> vector<8x8xf32>
    %cst_51 = arith.constant dense<0xFF800000> : vector<8xf32>
    %120 = vector.multi_reduction <maximumf>, %119, %cst_51 [1] : vector<8x8xf32> to vector<8xf32>
    %cst_52 = arith.constant 0xFF800000 : f32
    %121 = vector.broadcast %cst_52 : f32 to vector<8xf32>
    %122 = arith.maximumf %121, %120 : vector<8xf32>
    %123 = vector.shape_cast %122 : vector<8xf32> to vector<8x1xf32>
    %124 = vector.broadcast %123 : vector<8x1xf32> to vector<8x8xf32>
    %125 = arith.subf %119, %124 : vector<8x8xf32>
    %126 = math.exp %125 : vector<8x8xf32>
    %cst_53 = arith.constant dense<0.000000e+00> : vector<8xf32>
    %127 = vector.multi_reduction <add>, %126, %cst_53 [1] : vector<8x8xf32> to vector<8xf32>
    %128 = vector.shape_cast %127 : vector<8xf32> to vector<8x1xf32>
    %129 = vector.broadcast %128 : vector<8x1xf32> to vector<8x8xf32>
    %130 = arith.divf %126, %129 : vector<8x8xf32>
    %cst_54 = arith.constant dense<0.000000e+00> : vector<8x8xf32>
    %131 = tpu.matmul %130, %118, %cst_54 {dimension_numbers = #tpu.dot_dimension_numbers<[1], [0], [0], [1], [0, 0, 1, 1], [], []>} : vector<8x8xf32>, vector<8x8xf32>, vector<8x8xf32> -> vector<8x8xf32>
    %c16_55 = arith.constant 16 : index
    %c0_56 = arith.constant 0 : index
    %132 = vector.load %arg3[%c16_55, %c0_56] : memref<32x32xf32, #tpu.memory_space<vmem>>, vector<8x32xf32>
    %cst_57 = arith.constant dense<0.000000e+00> : vector<8x32xf32>
    %133 = tpu.matmul %131, %132, %cst_57 {dimension_numbers = #tpu.dot_dimension_numbers<[1], [0], [0], [1], [0, 0, 1, 1], [], []>} : vector<8x8xf32>, vector<8x32xf32>, vector<8x32xf32> -> vector<8x32xf32>
    %134 = arith.addf %115, %133 : vector<8x32xf32>
    %135 = vector.extract_strided_slice %2 {offsets = [8, 24], sizes = [8, 8], strides = [1, 1]} : vector<48x96xf32> to vector<8x8xf32>
    %136 = vector.extract_strided_slice %2 {offsets = [24, 56], sizes = [8, 8], strides = [1, 1]} : vector<48x96xf32> to vector<8x8xf32>
    %137 = vector.extract_strided_slice %2 {offsets = [40, 88], sizes = [8, 8], strides = [1, 1]} : vector<48x96xf32> to vector<8x8xf32>
    %cst_58 = arith.constant dense<0.000000e+00> : vector<8x8xf32>
    %138 = tpu.matmul %135, %136, %cst_58 {dimension_numbers = #tpu.dot_dimension_numbers<[1], [1], [0], [0], [0, 0, 1, 0], [], []>} : vector<8x8xf32>, vector<8x8xf32>, vector<8x8xf32> -> vector<8x8xf32>
    %cst_59 = arith.constant dense<0xFF800000> : vector<8xf32>
    %139 = vector.multi_reduction <maximumf>, %138, %cst_59 [1] : vector<8x8xf32> to vector<8xf32>
    %cst_60 = arith.constant 0xFF800000 : f32
    %140 = vector.broadcast %cst_60 : f32 to vector<8xf32>
    %141 = arith.maximumf %140, %139 : vector<8xf32>
    %142 = vector.shape_cast %141 : vector<8xf32> to vector<8x1xf32>
    %143 = vector.broadcast %142 : vector<8x1xf32> to vector<8x8xf32>
    %144 = arith.subf %138, %143 : vector<8x8xf32>
    %145 = math.exp %144 : vector<8x8xf32>
    %cst_61 = arith.constant dense<0.000000e+00> : vector<8xf32>
    %146 = vector.multi_reduction <add>, %145, %cst_61 [1] : vector<8x8xf32> to vector<8xf32>
    %147 = vector.shape_cast %146 : vector<8xf32> to vector<8x1xf32>
    %148 = vector.broadcast %147 : vector<8x1xf32> to vector<8x8xf32>
    %149 = arith.divf %145, %148 : vector<8x8xf32>
    %cst_62 = arith.constant dense<0.000000e+00> : vector<8x8xf32>
    %150 = tpu.matmul %149, %137, %cst_62 {dimension_numbers = #tpu.dot_dimension_numbers<[1], [0], [0], [1], [0, 0, 1, 1], [], []>} : vector<8x8xf32>, vector<8x8xf32>, vector<8x8xf32> -> vector<8x8xf32>
    %c24_63 = arith.constant 24 : index
    %c0_64 = arith.constant 0 : index
    %151 = vector.load %arg3[%c24_63, %c0_64] : memref<32x32xf32, #tpu.memory_space<vmem>>, vector<8x32xf32>
    %cst_65 = arith.constant dense<0.000000e+00> : vector<8x32xf32>
    %152 = tpu.matmul %150, %151, %cst_65 {dimension_numbers = #tpu.dot_dimension_numbers<[1], [0], [0], [1], [0, 0, 1, 1], [], []>} : vector<8x8xf32>, vector<8x32xf32>, vector<8x32xf32> -> vector<8x32xf32>
    %153 = arith.addf %134, %152 : vector<8x32xf32>
    %c8_66 = arith.constant 8 : index
    %c0_67 = arith.constant 0 : index
    %154 = vector.load %arg4[%c8_66, %c0_67] : memref<16x32xf32, #tpu.memory_space<vmem>>, vector<8x32xf32>
    tpu.vector_store %arg4[%c8_66, %c0_67], %153 {strides = array<i32>} : memref<16x32xf32, #tpu.memory_space<vmem>>, vector<8x32xf32>,
    return
  }
  func.func @transform_0(%arg0: i32) -> (i32, i32) {
    %c0_i32 = arith.constant 0 : i32
    %c0_i32_0 = arith.constant 0 : i32
    %c0_i32_1 = arith.constant 0 : i32
    return %c0_i32, %c0_i32_0 : i32, i32
  }
  func.func @transform_1(%arg0: i32) -> (i32, i32) {
    %c0_i32 = arith.constant 0 : i32
    %c0_i32_0 = arith.constant 0 : i32
    %c0_i32_1 = arith.constant 0 : i32
    return %c0_i32, %c0_i32_0 : i32, i32
  }
  func.func @transform_2(%arg0: i32) -> (i32, i32) {
    %c0_i32 = arith.constant 0 : i32
    %c0_i32_0 = arith.constant 0 : i32
    %c0_i32_1 = arith.constant 0 : i32
    return %c0_i32, %c0_i32_0 : i32, i32
  }
  func.func @transform_3(%arg0: i32) -> (i32, i32) {
    %c0_i32 = arith.constant 0 : i32
    %c0_i32_0 = arith.constant 0 : i32
    %c0_i32_1 = arith.constant 0 : i32
    return %c0_i32, %c0_i32_0 : i32, i32
  }
}

</mosaic_0001>

<llo_original>
// kernel: tpu_custom_call.1
$region0: #{tpu_custom_call.1}
  #allocation0 [shape = 'u32[]', space=smem, size = 0x4, offset = 0x4, fixed_abs, tag = 'smem constant byte address 0x4 - core index']
  #allocation1 [shape = 'u32[72,128]{1,0:T(1,128)}', space=vmem, size = 0x9000, scoped, tag = 'internal scratch']
  %s0 = inlined_call_operand.vmem [shape: f32[48,32], index: 0, kind: input, shape index: {}]
  %s1 = inlined_call_operand.vmem [shape: f32[32,96], index: 1, kind: input, shape index: {}]
  %s2 = inlined_call_operand.vmem [shape: f32[32,32], index: 2, kind: input, shape index: {}]
  %s3 = inlined_call_operand.hbm [shape: f32[16,32], index: 3, kind: output, shape index: {}]
  %s4 = sld [smem:[#allocation0]]
  $region22: #{tpu_custom_call.1} parent=0
    _
  %s6 = ssub.s32 1, %s4
  %s7 = scalar_select 0, %s6, %s4
  $region1: #{tpu_custom_call.1} parent=0
    #allocation2 [shape = 'u8[8192]{0}', space=vmem, size = 0x2000, scoped, tag = 'output window, operand 0, single buffered']
    #allocation3 [shape = 's32[1]{0}', space=sflag, size = 0x4, scoped, tag = 'scoped memory for tpu_custom_call.1']
    %8 = vsyncpa [#allocation3], 0
    // Predicated region
    $region2: #{tpu_custom_call.1} parent=1 // pred_check
      _
    $region3: #{tpu_custom_call.1} parent=1 // pred_check_branch
      %10 = sbr.rel (0) target = $region5
    $region4: #{tpu_custom_call.1} parent=1 // pred_region
      _
    $region5: #{tpu_custom_call.1} parent=1 // pred_fallthru
      _
    // Predicated region
    $region6: #{tpu_custom_call.1} parent=1 // pred_check
      _
    $region7: #{tpu_custom_call.1} parent=1 // pred_check_branch
      %12 = sbr.rel (0) target = $region9
    $region8: #{tpu_custom_call.1} parent=1 // pred_region
      _
    $region9: #{tpu_custom_call.1} parent=1 // pred_fallthru
      _
    // Predicated region
    $region10: #{tpu_custom_call.1} parent=1 // pred_check
      _
    $region11: #{tpu_custom_call.1} parent=1 // pred_check_branch
      %14 = sbr.rel (0) target = $region13
    $region12: #{tpu_custom_call.1} parent=1 // pred_region
      _
    $region13: #{tpu_custom_call.1} parent=1 // pred_fallthru
      _
    %v15 = vld [vmem:[%s0] sm:$0xff]
    %v16 = vld [vmem:[%s0 + $0x8] sm:$0xff]
    %v17 = vld [vmem:[%s0 + $0x10] sm:$0xff]
    %v18 = vld [vmem:[%s0 + $0x18] sm:$0xff]
    %v19 = vld [vmem:[%s0 + $0x20] sm:$0xff]
    %v20 = vld [vmem:[%s0 + $0x28] sm:$0xff]
    %v21 = vld [vmem:[%s1] sm:$0xff]
    %v22 = vld [vmem:[%s1 + $0x8] sm:$0xff]
    %v23 = vld [vmem:[%s1 + $0x10] sm:$0xff]
    %v24 = vld [vmem:[%s1 + $0x18] sm:$0xff]
    %vm25 = vcmask 261120
    %v27 = vsel %vm25, %v15, 0
    %v30 = vsel %vm25, %v16, 0
    %v33 = vsel %vm25, %v17, 0
    %v36 = vsel %vm25, %v18, 0
    %v39 = vsel %vm25, %v19, 0
    %v42 = vsel %vm25, %v20, 0
    %44 = vmatpush.msra.mxu0 0.0
    %45 = vmatpush.msra.mxu0 0.0
    %46 = vmatpush.msra.mxu0 0.0
    %47 = vmatpush.msra.mxu0 0.0
    %48 = vmatpush.msra.mxu0 0.0
    %49 = vmatpush.msra.mxu0 0.0
    %50 = vmatpush.msra.mxu0 0.0
    %51 = vmatpush.msra.mxu0 0.0
    %52 = vmatpush.msra.mxu0 0.0
    %53 = vmatpush.msra.mxu0 0.0
    %54 = vmatpush.msra.mxu0 0.0
    %55 = vmatpush.msra.mxu0 0.0
    %56 = vmatpush.msra.mxu0 %v24
    %57 = vmatpush.msra.mxu0 %v23
    %58 = vmatpush.msra.mxu0 %v22
    %59 = vmatpush.msra.mxu0 %v21
    %60 = vmatmul.f32.gmra.mxu0 %v27
    %v61 = vpop.f32.mrf.mxu0
    %v62 = vadd.f32 0.0, %v61
    %63 = vmatmul.f32.gmra.mxu0 %v30
    %v64 = vpop.f32.mrf.mxu0
    %v65 = vadd.f32 0.0, %v64
    %66 = vmatmul.f32.gmra.mxu0 %v33
    %v67 = vpop.f32.mrf.mxu0
    %v68 = vadd.f32 0.0, %v67
    %69 = vmatmul.f32.gmra.mxu0 %v36
    %v70 = vpop.f32.mrf.mxu0
    %v71 = vadd.f32 0.0, %v70
    %72 = vmatmul.f32.gmra.mxu0 %v39
    %v73 = vpop.f32.mrf.mxu0
    %v74 = vadd.f32 0.0, %v73
    %75 = vmatmul.f32.gmra.mxu0 %v42
    %v76 = vpop.f32.mrf.mxu0
    %v77 = vadd.f32 0.0, %v76
    %78 = vdwg.mxu0
    %80 = vrot.lane.b32.xlu0 %v68, 96
    %v81 = vpop.permute.xlu0 %80
    %vm82 = vcmask 64512
    %v84 = vsel %vm82, %v62, 0
    %v86 = vsel %vm82, %v81, 0
    %88 = vmatpush.xpose.msra.mxu0 0.0
    %89 = vmatpush.xpose.msra.mxu0 0.0
    %90 = vmatpush.xpose.msra.mxu0 0.0
    %91 = vmatpush.xpose.msra.mxu0 0.0
    %92 = vmatpush.xpose.msra.mxu0 0.0
    %93 = vmatpush.xpose.msra.mxu0 0.0
    %94 = vmatpush.xpose.msra.mxu0 0.0
    %95 = vmatpush.xpose.msra.mxu0 0.0
    %96 = vmatpush.xpose.msra.mxu0 0.0
    %97 = vmatpush.xpose.msra.mxu0 0.0
    %98 = vmatpush.xpose.msra.mxu0 0.0
    %99 = vmatpush.xpose.msra.mxu0 0.0
    %100 = vmatpush.xpose.msra.mxu0 0.0
    %101 = vmatpush.xpose.msra.mxu0 0.0
    %102 = vmatpush.xpose.msra.mxu0 0.0
    %103 = vmatpush.xpose.msra.mxu0 %v86
    %104 = vmatmul.f32.gmra.mxu0 %v84
    %v105 = vpop.f32.mrf.mxu0
    %v106 = vadd.f32 0.0, %v105
    %107 = vdwg.mxu0
    %v108 = vsel %vm82, %v106, -inf
    %109 = vmax.xlane.f32.xlu0 %v108
    %v110 = vpop.xlane.xlu0 %109
    %v111 = vsub.f32 %v106, %v110
    %v112 = vmul.f32 %v111, 1.442695
    %v113 = vpow.pop %v112
    %v114 = vsel %vm82, %v113, 0.0
    %115 = vadd.xlane.f32.xlu0 %v114
    %v116 = vpop.xlane.xlu0 %115
    %v117 = vrcp.pop %v116
    %v118 = vmul.f32 %v116, %v117
    %v119 = vsub.f32 1.0, %v118
    %v120 = vmul.f32 %v117, %v119
    %v121 = vadd.f32 %v117, %v120
    %vm122 = vweird.f32 %v116
    %vm123 = vweird.f32 %v117
    %vm124 = vmor %vm122, %vm123
    %v125 = vsel %vm124, %v117, %v121
    %v126 = vand.u32 2147483647, %v116
    %vm127 = vcmp.eq.f32.partialorder %v126, 8.507059e+37
    %v128 = vand.u32 %v116, 2147483648
    %v129 = vor.u32 1.1754944e-38, %v128
    %v130 = vsel %vm127, %v129, %v125
    %v131 = vmul.f32 %v113, %v130
    %133 = vrot.lane.b32.xlu0 %v74, 64
    %v134 = vpop.permute.xlu0 %133
    %v137 = vsel %vm82, %v131, 0
    %139 = vmatpush.msra.mxu0 0.0
    %140 = vmatpush.msra.mxu0 0.0
    %141 = vmatpush.msra.mxu0 0.0
    %142 = vmatpush.msra.mxu0 0.0
    %143 = vmatpush.msra.mxu0 0.0
    %144 = vmatpush.msra.mxu0 0.0
    %145 = vmatpush.msra.mxu0 0.0
    %146 = vmatpush.msra.mxu0 0.0
    %147 = vmatpush.msra.mxu0 0.0
    %148 = vmatpush.msra.mxu0 0.0
    %149 = vmatpush.msra.mxu0 0.0
    %150 = vmatpush.msra.mxu0 0.0
    %151 = vmatpush.msra.mxu0 0.0
    %152 = vmatpush.msra.mxu0 0.0
    %153 = vmatpush.msra.mxu0 0.0
    %154 = vmatpush.msra.mxu0 %v134
    %155 = vmatmul.f32.gmra.mxu0 %v137
    %v156 = vpop.f32.mrf.mxu0
    %v157 = vadd.f32 0.0, %v156
    %158 = vdwg.mxu0
    %v159 = vld [vmem:[%s2] sm:$0xff]
    %160 = vrot.lane.b32.xlu0 %v62, 120
    %v161 = vpop.permute.xlu0 %160
    %162 = vrot.lane.b32.xlu0 %v68, 88
    %v163 = vpop.permute.xlu0 %162
    %v164 = vsel %vm82, %v161, 0
    %v166 = vsel %vm82, %v163, 0
    %168 = vmatpush.xpose.msra.mxu0 0.0
    %169 = vmatpush.xpose.msra.mxu0 0.0
    %170 = vmatpush.xpose.msra.mxu0 0.0
    %171 = vmatpush.xpose.msra.mxu0 0.0
    %172 = vmatpush.xpose.msra.mxu0 0.0
    %173 = vmatpush.xpose.msra.mxu0 0.0
    %174 = vmatpush.xpose.msra.mxu0 0.0
    %175 = vmatpush.xpose.msra.mxu0 0.0
    %176 = vmatpush.xpose.msra.mxu0 0.0
    %177 = vmatpush.xpose.msra.mxu0 0.0
    %178 = vmatpush.xpose.msra.mxu0 0.0
    %179 = vmatpush.xpose.msra.mxu0 0.0
    %180 = vmatpush.xpose.msra.mxu0 0.0
    %181 = vmatpush.xpose.msra.mxu0 0.0
    %182 = vmatpush.xpose.msra.mxu0 0.0
    %183 = vmatpush.xpose.msra.mxu0 %v166
    %184 = vmatmul.f32.gmra.mxu0 %v164
    %v185 = vpop.f32.mrf.mxu0
    %v186 = vadd.f32 0.0, %v185
    %187 = vdwg.mxu0
    %v188 = vsel %vm82, %v186, -inf
    %189 = vmax.xlane.f32.xlu0 %v188
    %v190 = vpop.xlane.xlu0 %189
    %v191 = vsub.f32 %v186, %v190
    %v192 = vmul.f32 %v191, 1.442695
    %v193 = vpow.pop %v192
    %v194 = vsel %vm82, %v193, 0.0
    %195 = vadd.xlane.f32.xlu0 %v194
    %v196 = vpop.xlane.xlu0 %195
    %v197 = vrcp.pop %v196
    %v198 = vmul.f32 %v196, %v197
    %v199 = vsub.f32 1.0, %v198
    %v200 = vmul.f32 %v197, %v199
    %v201 = vadd.f32 %v197, %v200
    %vm202 = vweird.f32 %v196
    %vm203 = vweird.f32 %v197
    %vm204 = vmor %vm202, %vm203
    %v205 = vsel %vm204, %v197, %v201
    %v206 = vand.u32 2147483647, %v196
    %vm207 = vcmp.eq.f32.partialorder %v206, 8.507059e+37
    %v208 = vand.u32 %v196, 2147483648
    %v209 = vor.u32 1.1754944e-38, %v208
    %v210 = vsel %vm207, %v209, %v205
    %v211 = vmul.f32 %v193, %v210
    %212 = vrot.lane.b32.xlu0 %v74, 56
    %v213 = vpop.permute.xlu0 %212
    %v216 = vsel %vm82, %v211, 0
    %218 = vmatpush.msra.mxu0 0.0
    %219 = vmatpush.msra.mxu0 0.0
    %220 = vmatpush.msra.mxu0 0.0
    %221 = vmatpush.msra.mxu0 0.0
    %222 = vmatpush.msra.mxu0 0.0
    %223 = vmatpush.msra.mxu0 0.0
    %224 = vmatpush.msra.mxu0 0.0
    %225 = vmatpush.msra.mxu0 0.0
    %226 = vmatpush.msra.mxu0 0.0
    %227 = vmatpush.msra.mxu0 0.0
    %228 = vmatpush.msra.mxu0 0.0
    %229 = vmatpush.msra.mxu0 0.0
    %230 = vmatpush.msra.mxu0 0.0
    %231 = vmatpush.msra.mxu0 0.0
    %232 = vmatpush.msra.mxu0 0.0
    %233 = vmatpush.msra.mxu0 %v213
    %234 = vmatmul.f32.gmra.mxu0 %v216
    %v235 = vpop.f32.mrf.mxu0
    %v236 = vadd.f32 0.0, %v235
    %237 = vdwg.mxu0
    %v238 = vld [vmem:[%s2 + $0x8] sm:$0xff]
    %v240 = vsel %vm82, %v236, 0
    %242 = vmatpush.msra.mxu0 0.0
    %243 = vmatpush.msra.mxu0 0.0
    %244 = vmatpush.msra.mxu0 0.0
    %245 = vmatpush.msra.mxu0 0.0
    %246 = vmatpush.msra.mxu0 0.0
    %247 = vmatpush.msra.mxu0 0.0
    %248 = vmatpush.msra.mxu0 0.0
    %249 = vmatpush.msra.mxu0 0.0
    %250 = vmatpush.msra.mxu0 0.0
    %251 = vmatpush.msra.mxu0 0.0
    %252 = vmatpush.msra.mxu0 0.0
    %253 = vmatpush.msra.mxu0 0.0
    %254 = vmatpush.msra.mxu0 0.0
    %255 = vmatpush.msra.mxu0 0.0
    %256 = vmatpush.msra.mxu0 0.0
    %257 = vmatpush.msra.mxu0 %v238
    %258 = vmatmul.f32.gmra.mxu0 %v240
    %v259 = vpop.f32.mrf.mxu0
    %v260 = vadd.f32 0.0, %v259
    %261 = vdwg.mxu0
    %v263 = vsel %vm82, %v157, 0
    %265 = vmatpush.msra.mxu0 0.0
    %266 = vmatpush.msra.mxu0 0.0
    %267 = vmatpush.msra.mxu0 0.0
    %268 = vmatpush.msra.mxu0 0.0
    %269 = vmatpush.msra.mxu0 0.0
    %270 = vmatpush.msra.mxu0 0.0
    %271 = vmatpush.msra.mxu0 0.0
    %272 = vmatpush.msra.mxu0 0.0
    %273 = vmatpush.msra.mxu0 0.0
    %274 = vmatpush.msra.mxu0 0.0
    %275 = vmatpush.msra.mxu0 0.0
    %276 = vmatpush.msra.mxu0 0.0
    %277 = vmatpush.msra.mxu0 0.0
    %278 = vmatpush.msra.mxu0 0.0
    %279 = vmatpush.msra.mxu0 0.0
    %280 = vmatpush.msra.mxu0 %v159
    %281 = vmatmul.f32.gmra.mxu0 %v263
    %v282 = vpop.f32.mrf.mxu0
    %v283 = vadd.f32 %v260, %v282
    %284 = vdwg.mxu0
    %285 = vrot.lane.b32.xlu0 %v62, 112
    %v286 = vpop.permute.xlu0 %285
    %287 = vrot.lane.b32.xlu0 %v68, 80
    %v288 = vpop.permute.xlu0 %287
    %v289 = vsel %vm82, %v286, 0
    %v291 = vsel %vm82, %v288, 0
    %293 = vmatpush.xpose.msra.mxu0 0.0
    %294 = vmatpush.xpose.msra.mxu0 0.0
    %295 = vmatpush.xpose.msra.mxu0 0.0
    %296 = vmatpush.xpose.msra.mxu0 0.0
    %297 = vmatpush.xpose.msra.mxu0 0.0
    %298 = vmatpush.xpose.msra.mxu0 0.0
    %299 = vmatpush.xpose.msra.mxu0 0.0
    %300 = vmatpush.xpose.msra.mxu0 0.0
    %301 = vmatpush.xpose.msra.mxu0 0.0
    %302 = vmatpush.xpose.msra.mxu0 0.0
    %303 = vmatpush.xpose.msra.mxu0 0.0
    %304 = vmatpush.xpose.msra.mxu0 0.0
    %305 = vmatpush.xpose.msra.mxu0 0.0
    %306 = vmatpush.xpose.msra.mxu0 0.0
    %307 = vmatpush.xpose.msra.mxu0 0.0
    %308 = vmatpush.xpose.msra.mxu0 %v291
    %309 = vmatmul.f32.gmra.mxu0 %v289
    %v310 = vpop.f32.mrf.mxu0
    %v311 = vadd.f32 0.0, %v310
    %312 = vdwg.mxu0
    %v313 = vsel %vm82, %v311, -inf
    %314 = vmax.xlane.f32.xlu0 %v313
    %v315 = vpop.xlane.xlu0 %314
    %v316 = vsub.f32 %v311, %v315
    %v317 = vmul.f32 %v316, 1.442695
    %v318 = vpow.pop %v317
    %v319 = vsel %vm82, %v318, 0.0
    %320 = vadd.xlane.f32.xlu0 %v319
    %v321 = vpop.xlane.xlu0 %320
    %v322 = vrcp.pop %v321
    %v323 = vmul.f32 %v321, %v322
    %v324 = vsub.f32 1.0, %v323
    %v325 = vmul.f32 %v322, %v324
    %v326 = vadd.f32 %v322, %v325
    %vm327 = vweird.f32 %v321
    %vm328 = vweird.f32 %v322
    %vm329 = vmor %vm327, %vm328
    %v330 = vsel %vm329, %v322, %v326
    %v331 = vand.u32 2147483647, %v321
    %vm332 = vcmp.eq.f32.partialorder %v331, 8.507059e+37
    %v333 = vand.u32 %v321, 2147483648
    %v334 = vor.u32 1.1754944e-38, %v333
    %v335 = vsel %vm332, %v334, %v330
    %v336 = vmul.f32 %v318, %v335
    %337 = vrot.lane.b32.xlu0 %v74, 48
    %v338 = vpop.permute.xlu0 %337
    %v341 = vsel %vm82, %v336, 0
    %343 = vmatpush.msra.mxu0 0.0
    %344 = vmatpush.msra.mxu0 0.0
    %345 = vmatpush.msra.mxu0 0.0
    %346 = vmatpush.msra.mxu0 0.0
    %347 = vmatpush.msra.mxu0 0.0
    %348 = vmatpush.msra.mxu0 0.0
    %349 = vmatpush.msra.mxu0 0.0
    %350 = vmatpush.msra.mxu0 0.0
    %351 = vmatpush.msra.mxu0 0.0
    %352 = vmatpush.msra.mxu0 0.0
    %353 = vmatpush.msra.mxu0 0.0
    %354 = vmatpush.msra.mxu0 0.0
    %355 = vmatpush.msra.mxu0 0.0
    %356 = vmatpush.msra.mxu0 0.0
    %357 = vmatpush.msra.mxu0 0.0
    %358 = vmatpush.msra.mxu0 %v338
    %359 = vmatmul.f32.gmra.mxu0 %v341
    %v360 = vpop.f32.mrf.mxu0
    %v361 = vadd.f32 0.0, %v360
    %362 = vdwg.mxu0
    %v363 = vld [vmem:[%s2 + $0x10] sm:$0xff]
    %v365 = vsel %vm82, %v361, 0
    %367 = vmatpush.msra.mxu0 0.0
    %368 = vmatpush.msra.mxu0 0.0
    %369 = vmatpush.msra.mxu0 0.0
    %370 = vmatpush.msra.mxu0 0.0
    %371 = vmatpush.msra.mxu0 0.0
    %372 = vmatpush.msra.mxu0 0.0
    %373 = vmatpush.msra.mxu0 0.0
    %374 = vmatpush.msra.mxu0 0.0
    %375 = vmatpush.msra.mxu0 0.0
    %376 = vmatpush.msra.mxu0 0.0
    %377 = vmatpush.msra.mxu0 0.0
    %378 = vmatpush.msra.mxu0 0.0
    %379 = vmatpush.msra.mxu0 0.0
    %380 = vmatpush.msra.mxu0 0.0
    %381 = vmatpush.msra.mxu0 0.0
    %382 = vmatpush.msra.mxu0 %v363
    %383 = vmatmul.f32.gmra.mxu0 %v365
    %v384 = vpop.f32.mrf.mxu0
    %v385 = vadd.f32 0.0, %v384
    %386 = vdwg.mxu0
    %v387 = vadd.f32 %v283, %v385
    %388 = vrot.lane.b32.xlu0 %v62, 104
    %v389 = vpop.permute.xlu0 %388
    %390 = vrot.lane.b32.xlu0 %v68, 72
    %v391 = vpop.permute.xlu0 %390
    %v392 = vsel %vm82, %v389, 0
    %v394 = vsel %vm82, %v391, 0
    %396 = vmatpush.xpose.msra.mxu0 0.0
    %397 = vmatpush.xpose.msra.mxu0 0.0
    %398 = vmatpush.xpose.msra.mxu0 0.0
    %399 = vmatpush.xpose.msra.mxu0 0.0
    %400 = vmatpush.xpose.msra.mxu0 0.0
    %401 = vmatpush.xpose.msra.mxu0 0.0
    %402 = vmatpush.xpose.msra.mxu0 0.0
    %403 = vmatpush.xpose.msra.mxu0 0.0
    %404 = vmatpush.xpose.msra.mxu0 0.0
    %405 = vmatpush.xpose.msra.mxu0 0.0
    %406 = vmatpush.xpose.msra.mxu0 0.0
    %407 = vmatpush.xpose.msra.mxu0 0.0
    %408 = vmatpush.xpose.msra.mxu0 0.0
    %409 = vmatpush.xpose.msra.mxu0 0.0
    %410 = vmatpush.xpose.msra.mxu0 0.0
    %411 = vmatpush.xpose.msra.mxu0 %v394
    %412 = vmatmul.f32.gmra.mxu0 %v392
    %v413 = vpop.f32.mrf.mxu0
    %v414 = vadd.f32 0.0, %v413
    %415 = vdwg.mxu0
    %v416 = vsel %vm82, %v414, -inf
    %417 = vmax.xlane.f32.xlu0 %v416
    %v418 = vpop.xlane.xlu0 %417
    %v419 = vsub.f32 %v414, %v418
    %v420 = vmul.f32 %v419, 1.442695
    %v421 = vpow.pop %v420
    %v422 = vsel %vm82, %v421, 0.0
    %423 = vadd.xlane.f32.xlu0 %v422
    %v424 = vpop.xlane.xlu0 %423
    %v425 = vrcp.pop %v424
    %v426 = vmul.f32 %v424, %v425
    %v427 = vsub.f32 1.0, %v426
    %v428 = vmul.f32 %v425, %v427
    %v429 = vadd.f32 %v425, %v428
    %vm430 = vweird.f32 %v424
    %vm431 = vweird.f32 %v425
    %vm432 = vmor %vm430, %vm431
    %v433 = vsel %vm432, %v425, %v429
    %v434 = vand.u32 2147483647, %v424
    %vm435 = vcmp.eq.f32.partialorder %v434, 8.507059e+37
    %v436 = vand.u32 %v424, 2147483648
    %v437 = vor.u32 1.1754944e-38, %v436
    %v438 = vsel %vm435, %v437, %v433
    %v439 = vmul.f32 %v421, %v438
    %440 = vrot.lane.b32.xlu0 %v74, 40
    %v441 = vpop.permute.xlu0 %440
    %v444 = vsel %vm82, %v439, 0
    %446 = vmatpush.msra.mxu0 0.0
    %447 = vmatpush.msra.mxu0 0.0
    %448 = vmatpush.msra.mxu0 0.0
    %449 = vmatpush.msra.mxu0 0.0
    %450 = vmatpush.msra.mxu0 0.0
    %451 = vmatpush.msra.mxu0 0.0
    %452 = vmatpush.msra.mxu0 0.0
    %453 = vmatpush.msra.mxu0 0.0
    %454 = vmatpush.msra.mxu0 0.0
    %455 = vmatpush.msra.mxu0 0.0
    %456 = vmatpush.msra.mxu0 0.0
    %457 = vmatpush.msra.mxu0 0.0
    %458 = vmatpush.msra.mxu0 0.0
    %459 = vmatpush.msra.mxu0 0.0
    %460 = vmatpush.msra.mxu0 0.0
    %461 = vmatpush.msra.mxu0 %v441
    %462 = vmatmul.f32.gmra.mxu0 %v444
    %v463 = vpop.f32.mrf.mxu0
    %v464 = vadd.f32 0.0, %v463
    %465 = vdwg.mxu0
    %v466 = vld [vmem:[%s2 + $0x18] sm:$0xff]
    %v468 = vsel %vm82, %v464, 0
    %470 = vmatpush.msra.mxu0 0.0
    %471 = vmatpush.msra.mxu0 0.0
    %472 = vmatpush.msra.mxu0 0.0
    %473 = vmatpush.msra.mxu0 0.0
    %474 = vmatpush.msra.mxu0 0.0
    %475 = vmatpush.msra.mxu0 0.0
    %476 = vmatpush.msra.mxu0 0.0
    %477 = vmatpush.msra.mxu0 0.0
    %478 = vmatpush.msra.mxu0 0.0
    %479 = vmatpush.msra.mxu0 0.0
    %480 = vmatpush.msra.mxu0 0.0
    %481 = vmatpush.msra.mxu0 0.0
    %482 = vmatpush.msra.mxu0 0.0
    %483 = vmatpush.msra.mxu0 0.0
    %484 = vmatpush.msra.mxu0 0.0
    %485 = vmatpush.msra.mxu0 %v466
    %486 = vmatmul.f32.gmra.mxu0 %v468
    %v487 = vpop.f32.mrf.mxu0
    %v488 = vadd.f32 0.0, %v487
    %489 = vdwg.mxu0
    %v490 = vadd.f32 %v387, %v488
    %491 = vst.msk [vmem:[#allocation2] sm:$0xff] %vm25, %v490
    %493 = vrot.lane.b32.xlu0 %v71, 96
    %v494 = vpop.permute.xlu0 %493
    %v496 = vsel %vm82, %v65, 0
    %v498 = vsel %vm82, %v494, 0
    %500 = vmatpush.xpose.msra.mxu0 0.0
    %501 = vmatpush.xpose.msra.mxu0 0.0
    %502 = vmatpush.xpose.msra.mxu0 0.0
    %503 = vmatpush.xpose.msra.mxu0 0.0
    %504 = vmatpush.xpose.msra.mxu0 0.0
    %505 = vmatpush.xpose.msra.mxu0 0.0
    %506 = vmatpush.xpose.msra.mxu0 0.0
    %507 = vmatpush.xpose.msra.mxu0 0.0
    %508 = vmatpush.xpose.msra.mxu0 0.0
    %509 = vmatpush.xpose.msra.mxu0 0.0
    %510 = vmatpush.xpose.msra.mxu0 0.0
    %511 = vmatpush.xpose.msra.mxu0 0.0
    %512 = vmatpush.xpose.msra.mxu0 0.0
    %513 = vmatpush.xpose.msra.mxu0 0.0
    %514 = vmatpush.xpose.msra.mxu0 0.0
    %515 = vmatpush.xpose.msra.mxu0 %v498
    %516 = vmatmul.f32.gmra.mxu0 %v496
    %v517 = vpop.f32.mrf.mxu0
    %v518 = vadd.f32 0.0, %v517
    %519 = vdwg.mxu0
    %v520 = vsel %vm82, %v518, -inf
    %521 = vmax.xlane.f32.xlu0 %v520
    %v522 = vpop.xlane.xlu0 %521
    %v523 = vsub.f32 %v518, %v522
    %v524 = vmul.f32 %v523, 1.442695
    %v525 = vpow.pop %v524
    %v526 = vsel %vm82, %v525, 0.0
    %527 = vadd.xlane.f32.xlu0 %v526
    %v528 = vpop.xlane.xlu0 %527
    %v529 = vrcp.pop %v528
    %v530 = vmul.f32 %v528, %v529
    %v531 = vsub.f32 1.0, %v530
    %v532 = vmul.f32 %v529, %v531
    %v533 = vadd.f32 %v529, %v532
    %vm534 = vweird.f32 %v528
    %vm535 = vweird.f32 %v529
    %vm536 = vmor %vm534, %vm535
    %v537 = vsel %vm536, %v529, %v533
    %v538 = vand.u32 2147483647, %v528
    %vm539 = vcmp.eq.f32.partialorder %v538, 8.507059e+37
    %v540 = vand.u32 %v528, 2147483648
    %v541 = vor.u32 1.1754944e-38, %v540
    %v542 = vsel %vm539, %v541, %v537
    %v543 = vmul.f32 %v525, %v542
    %545 = vrot.lane.b32.xlu0 %v77, 64
    %v546 = vpop.permute.xlu0 %545
    %v549 = vsel %vm82, %v543, 0
    %551 = vmatpush.msra.mxu0 0.0
    %552 = vmatpush.msra.mxu0 0.0
    %553 = vmatpush.msra.mxu0 0.0
    %554 = vmatpush.msra.mxu0 0.0
    %555 = vmatpush.msra.mxu0 0.0
    %556 = vmatpush.msra.mxu0 0.0
    %557 = vmatpush.msra.mxu0 0.0
    %558 = vmatpush.msra.mxu0 0.0
    %559 = vmatpush.msra.mxu0 0.0
    %560 = vmatpush.msra.mxu0 0.0
    %561 = vmatpush.msra.mxu0 0.0
    %562 = vmatpush.msra.mxu0 0.0
    %563 = vmatpush.msra.mxu0 0.0
    %564 = vmatpush.msra.mxu0 0.0
    %565 = vmatpush.msra.mxu0 0.0
    %566 = vmatpush.msra.mxu0 %v546
    %567 = vmatmul.f32.gmra.mxu0 %v549
    %v568 = vpop.f32.mrf.mxu0
    %v569 = vadd.f32 0.0, %v568
    %570 = vdwg.mxu0
    %v571 = vld [vmem:[%s2] sm:$0xff]
    %572 = vrot.lane.b32.xlu0 %v65, 120
    %v573 = vpop.permute.xlu0 %572
    %574 = vrot.lane.b32.xlu0 %v71, 88
    %v575 = vpop.permute.xlu0 %574
    %v576 = vsel %vm82, %v573, 0
    %v578 = vsel %vm82, %v575, 0
    %580 = vmatpush.xpose.msra.mxu0 0.0
    %581 = vmatpush.xpose.msra.mxu0 0.0
    %582 = vmatpush.xpose.msra.mxu0 0.0
    %583 = vmatpush.xpose.msra.mxu0 0.0
    %584 = vmatpush.xpose.msra.mxu0 0.0
    %585 = vmatpush.xpose.msra.mxu0 0.0
    %586 = vmatpush.xpose.msra.mxu0 0.0
    %587 = vmatpush.xpose.msra.mxu0 0.0
    %588 = vmatpush.xpose.msra.mxu0 0.0
    %589 = vmatpush.xpose.msra.mxu0 0.0
    %590 = vmatpush.xpose.msra.mxu0 0.0
    %591 = vmatpush.xpose.msra.mxu0 0.0
    %592 = vmatpush.xpose.msra.mxu0 0.0
    %593 = vmatpush.xpose.msra.mxu0 0.0
    %594 = vmatpush.xpose.msra.mxu0 0.0
    %595 = vmatpush.xpose.msra.mxu0 %v578
    %596 = vmatmul.f32.gmra.mxu0 %v576
    %v597 = vpop.f32.mrf.mxu0
    %v598 = vadd.f32 0.0, %v597
    %599 = vdwg.mxu0
    %v600 = vsel %vm82, %v598, -inf
    %601 = vmax.xlane.f32.xlu0 %v600
    %v602 = vpop.xlane.xlu0 %601
    %v603 = vsub.f32 %v598, %v602
    %v604 = vmul.f32 %v603, 1.442695
    %v605 = vpow.pop %v604
    %v606 = vsel %vm82, %v605, 0.0
    %607 = vadd.xlane.f32.xlu0 %v606
    %v608 = vpop.xlane.xlu0 %607
    %v609 = vrcp.pop %v608
    %v610 = vmul.f32 %v608, %v609
    %v611 = vsub.f32 1.0, %v610
    %v612 = vmul.f32 %v609, %v611
    %v613 = vadd.f32 %v609, %v612
    %vm614 = vweird.f32 %v608
    %vm615 = vweird.f32 %v609
    %vm616 = vmor %vm614, %vm615
    %v617 = vsel %vm616, %v609, %v613
    %v618 = vand.u32 2147483647, %v608
    %vm619 = vcmp.eq.f32.partialorder %v618, 8.507059e+37
    %v620 = vand.u32 %v608, 2147483648
    %v621 = vor.u32 1.1754944e-38, %v620
    %v622 = vsel %vm619, %v621, %v617
    %v623 = vmul.f32 %v605, %v622
    %624 = vrot.lane.b32.xlu0 %v77, 56
    %v625 = vpop.permute.xlu0 %624
    %v628 = vsel %vm82, %v623, 0
    %630 = vmatpush.msra.mxu0 0.0
    %631 = vmatpush.msra.mxu0 0.0
    %632 = vmatpush.msra.mxu0 0.0
    %633 = vmatpush.msra.mxu0 0.0
    %634 = vmatpush.msra.mxu0 0.0
    %635 = vmatpush.msra.mxu0 0.0
    %636 = vmatpush.msra.mxu0 0.0
    %637 = vmatpush.msra.mxu0 0.0
    %638 = vmatpush.msra.mxu0 0.0
    %639 = vmatpush.msra.mxu0 0.0
    %640 = vmatpush.msra.mxu0 0.0
    %641 = vmatpush.msra.mxu0 0.0
    %642 = vmatpush.msra.mxu0 0.0
    %643 = vmatpush.msra.mxu0 0.0
    %644 = vmatpush.msra.mxu0 0.0
    %645 = vmatpush.msra.mxu0 %v625
    %646 = vmatmul.f32.gmra.mxu0 %v628
    %v647 = vpop.f32.mrf.mxu0
    %v648 = vadd.f32 0.0, %v647
    %649 = vdwg.mxu0
    %v650 = vld [vmem:[%s2 + $0x8] sm:$0xff]
    %v652 = vsel %vm82, %v648, 0
    %654 = vmatpush.msra.mxu0 0.0
    %655 = vmatpush.msra.mxu0 0.0
    %656 = vmatpush.msra.mxu0 0.0
    %657 = vmatpush.msra.mxu0 0.0
    %658 = vmatpush.msra.mxu0 0.0
    %659 = vmatpush.msra.mxu0 0.0
    %660 = vmatpush.msra.mxu0 0.0
    %661 = vmatpush.msra.mxu0 0.0
    %662 = vmatpush.msra.mxu0 0.0
    %663 = vmatpush.msra.mxu0 0.0
    %664 = vmatpush.msra.mxu0 0.0
    %665 = vmatpush.msra.mxu0 0.0
    %666 = vmatpush.msra.mxu0 0.0
    %667 = vmatpush.msra.mxu0 0.0
    %668 = vmatpush.msra.mxu0 0.0
    %669 = vmatpush.msra.mxu0 %v650
    %670 = vmatmul.f32.gmra.mxu0 %v652
    %v671 = vpop.f32.mrf.mxu0
    %v672 = vadd.f32 0.0, %v671
    %673 = vdwg.mxu0
    %v675 = vsel %vm82, %v569, 0
    %677 = vmatpush.msra.mxu0 0.0
    %678 = vmatpush.msra.mxu0 0.0
    %679 = vmatpush.msra.mxu0 0.0
    %680 = vmatpush.msra.mxu0 0.0
    %681 = vmatpush.msra.mxu0 0.0
    %682 = vmatpush.msra.mxu0 0.0
    %683 = vmatpush.msra.mxu0 0.0
    %684 = vmatpush.msra.mxu0 0.0
    %685 = vmatpush.msra.mxu0 0.0
    %686 = vmatpush.msra.mxu0 0.0
    %687 = vmatpush.msra.mxu0 0.0
    %688 = vmatpush.msra.mxu0 0.0
    %689 = vmatpush.msra.mxu0 0.0
    %690 = vmatpush.msra.mxu0 0.0
    %691 = vmatpush.msra.mxu0 0.0
    %692 = vmatpush.msra.mxu0 %v571
    %693 = vmatmul.f32.gmra.mxu0 %v675
    %v694 = vpop.f32.mrf.mxu0
    %v695 = vadd.f32 %v672, %v694
    %696 = vdwg.mxu0
    %697 = vrot.lane.b32.xlu0 %v65, 112
    %v698 = vpop.permute.xlu0 %697
    %699 = vrot.lane.b32.xlu0 %v71, 80
    %v700 = vpop.permute.xlu0 %699
    %v701 = vsel %vm82, %v698, 0
    %v703 = vsel %vm82, %v700, 0
    %705 = vmatpush.xpose.msra.mxu0 0.0
    %706 = vmatpush.xpose.msra.mxu0 0.0
    %707 = vmatpush.xpose.msra.mxu0 0.0
    %708 = vmatpush.xpose.msra.mxu0 0.0
    %709 = vmatpush.xpose.msra.mxu0 0.0
    %710 = vmatpush.xpose.msra.mxu0 0.0
    %711 = vmatpush.xpose.msra.mxu0 0.0
    %712 = vmatpush.xpose.msra.mxu0 0.0
    %713 = vmatpush.xpose.msra.mxu0 0.0
    %714 = vmatpush.xpose.msra.mxu0 0.0
    %715 = vmatpush.xpose.msra.mxu0 0.0
    %716 = vmatpush.xpose.msra.mxu0 0.0
    %717 = vmatpush.xpose.msra.mxu0 0.0
    %718 = vmatpush.xpose.msra.mxu0 0.0
    %719 = vmatpush.xpose.msra.mxu0 0.0
    %720 = vmatpush.xpose.msra.mxu0 %v703
    %721 = vmatmul.f32.gmra.mxu0 %v701
    %v722 = vpop.f32.mrf.mxu0
    %v723 = vadd.f32 0.0, %v722
    %724 = vdwg.mxu0
    %v725 = vsel %vm82, %v723, -inf
    %726 = vmax.xlane.f32.xlu0 %v725
    %v727 = vpop.xlane.xlu0 %726
    %v728 = vsub.f32 %v723, %v727
    %v729 = vmul.f32 %v728, 1.442695
    %v730 = vpow.pop %v729
    %v731 = vsel %vm82, %v730, 0.0
    %732 = vadd.xlane.f32.xlu0 %v731
    %v733 = vpop.xlane.xlu0 %732
    %v734 = vrcp.pop %v733
    %v735 = vmul.f32 %v733, %v734
    %v736 = vsub.f32 1.0, %v735
    %v737 = vmul.f32 %v734, %v736
    %v738 = vadd.f32 %v734, %v737
    %vm739 = vweird.f32 %v733
    %vm740 = vweird.f32 %v734
    %vm741 = vmor %vm739, %vm740
    %v742 = vsel %vm741, %v734, %v738
    %v743 = vand.u32 2147483647, %v733
    %vm744 = vcmp.eq.f32.partialorder %v743, 8.507059e+37
    %v745 = vand.u32 %v733, 2147483648
    %v746 = vor.u32 1.1754944e-38, %v745
    %v747 = vsel %vm744, %v746, %v742
    %v748 = vmul.f32 %v730, %v747
    %749 = vrot.lane.b32.xlu0 %v77, 48
    %v750 = vpop.permute.xlu0 %749
    %v753 = vsel %vm82, %v748, 0
    %755 = vmatpush.msra.mxu0 0.0
    %756 = vmatpush.msra.mxu0 0.0
    %757 = vmatpush.msra.mxu0 0.0
    %758 = vmatpush.msra.mxu0 0.0
    %759 = vmatpush.msra.mxu0 0.0
    %760 = vmatpush.msra.mxu0 0.0
    %761 = vmatpush.msra.mxu0 0.0
    %762 = vmatpush.msra.mxu0 0.0
    %763 = vmatpush.msra.mxu0 0.0
    %764 = vmatpush.msra.mxu0 0.0
    %765 = vmatpush.msra.mxu0 0.0
    %766 = vmatpush.msra.mxu0 0.0
    %767 = vmatpush.msra.mxu0 0.0
    %768 = vmatpush.msra.mxu0 0.0
    %769 = vmatpush.msra.mxu0 0.0
    %770 = vmatpush.msra.mxu0 %v750
    %771 = vmatmul.f32.gmra.mxu0 %v753
    %v772 = vpop.f32.mrf.mxu0
    %v773 = vadd.f32 0.0, %v772
    %774 = vdwg.mxu0
    %v775 = vld [vmem:[%s2 + $0x10] sm:$0xff]
    %v777 = vsel %vm82, %v773, 0
    %779 = vmatpush.msra.mxu0 0.0
    %780 = vmatpush.msra.mxu0 0.0
    %781 = vmatpush.msra.mxu0 0.0
    %782 = vmatpush.msra.mxu0 0.0
    %783 = vmatpush.msra.mxu0 0.0
    %784 = vmatpush.msra.mxu0 0.0
    %785 = vmatpush.msra.mxu0 0.0
    %786 = vmatpush.msra.mxu0 0.0
    %787 = vmatpush.msra.mxu0 0.0
    %788 = vmatpush.msra.mxu0 0.0
    %789 = vmatpush.msra.mxu0 0.0
    %790 = vmatpush.msra.mxu0 0.0
    %791 = vmatpush.msra.mxu0 0.0
    %792 = vmatpush.msra.mxu0 0.0
    %793 = vmatpush.msra.mxu0 0.0
    %794 = vmatpush.msra.mxu0 %v775
    %795 = vmatmul.f32.gmra.mxu0 %v777
    %v796 = vpop.f32.mrf.mxu0
    %v797 = vadd.f32 0.0, %v796
    %798 = vdwg.mxu0
    %v799 = vadd.f32 %v695, %v797
    %800 = vrot.lane.b32.xlu0 %v65, 104
    %v801 = vpop.permute.xlu0 %800
    %802 = vrot.lane.b32.xlu0 %v71, 72
    %v803 = vpop.permute.xlu0 %802
    %v804 = vsel %vm82, %v801, 0
    %v806 = vsel %vm82, %v803, 0
    %808 = vmatpush.xpose.msra.mxu0 0.0
    %809 = vmatpush.xpose.msra.mxu0 0.0
    %810 = vmatpush.xpose.msra.mxu0 0.0
    %811 = vmatpush.xpose.msra.mxu0 0.0
    %812 = vmatpush.xpose.msra.mxu0 0.0
    %813 = vmatpush.xpose.msra.mxu0 0.0
    %814 = vmatpush.xpose.msra.mxu0 0.0
    %815 = vmatpush.xpose.msra.mxu0 0.0
    %816 = vmatpush.xpose.msra.mxu0 0.0
    %817 = vmatpush.xpose.msra.mxu0 0.0
    %818 = vmatpush.xpose.msra.mxu0 0.0
    %819 = vmatpush.xpose.msra.mxu0 0.0
    %820 = vmatpush.xpose.msra.mxu0 0.0
    %821 = vmatpush.xpose.msra.mxu0 0.0
    %822 = vmatpush.xpose.msra.mxu0 0.0
    %823 = vmatpush.xpose.msra.mxu0 %v806
    %824 = vmatmul.f32.gmra.mxu0 %v804
    %v825 = vpop.f32.mrf.mxu0
    %v826 = vadd.f32 0.0, %v825
    %827 = vdwg.mxu0
    %v828 = vsel %vm82, %v826, -inf
    %829 = vmax.xlane.f32.xlu0 %v828
    %v830 = vpop.xlane.xlu0 %829
    %v831 = vsub.f32 %v826, %v830
    %v832 = vmul.f32 %v831, 1.442695
    %v833 = vpow.pop %v832
    %v834 = vsel %vm82, %v833, 0.0
    %835 = vadd.xlane.f32.xlu0 %v834
    %v836 = vpop.xlane.xlu0 %835
    %v837 = vrcp.pop %v836
    %v838 = vmul.f32 %v836, %v837
    %v839 = vsub.f32 1.0, %v838
    %v840 = vmul.f32 %v837, %v839
    %v841 = vadd.f32 %v837, %v840
    %vm842 = vweird.f32 %v836
    %vm843 = vweird.f32 %v837
    %vm844 = vmor %vm842, %vm843
    %v845 = vsel %vm844, %v837, %v841
    %v846 = vand.u32 2147483647, %v836
    %vm847 = vcmp.eq.f32.partialorder %v846, 8.507059e+37
    %v848 = vand.u32 %v836, 2147483648
    %v849 = vor.u32 1.1754944e-38, %v848
    %v850 = vsel %vm847, %v849, %v845
    %v851 = vmul.f32 %v833, %v850
    %852 = vrot.lane.b32.xlu0 %v77, 40
    %v853 = vpop.permute.xlu0 %852
    %v856 = vsel %vm82, %v851, 0
    %858 = vmatpush.msra.mxu0 0.0
    %859 = vmatpush.msra.mxu0 0.0
    %860 = vmatpush.msra.mxu0 0.0
    %861 = vmatpush.msra.mxu0 0.0
    %862 = vmatpush.msra.mxu0 0.0
    %863 = vmatpush.msra.mxu0 0.0
    %864 = vmatpush.msra.mxu0 0.0
    %865 = vmatpush.msra.mxu0 0.0
    %866 = vmatpush.msra.mxu0 0.0
    %867 = vmatpush.msra.mxu0 0.0
    %868 = vmatpush.msra.mxu0 0.0
    %869 = vmatpush.msra.mxu0 0.0
    %870 = vmatpush.msra.mxu0 0.0
    %871 = vmatpush.msra.mxu0 0.0
    %872 = vmatpush.msra.mxu0 0.0
    %873 = vmatpush.msra.mxu0 %v853
    %874 = vmatmul.f32.gmra.mxu0 %v856
    %v875 = vpop.f32.mrf.mxu0
    %v876 = vadd.f32 0.0, %v875
    %877 = vdwg.mxu0
    %v878 = vld [vmem:[%s2 + $0x18] sm:$0xff]
    %v880 = vsel %vm82, %v876, 0
    %882 = vmatpush.msra.mxu0 0.0
    %883 = vmatpush.msra.mxu0 0.0
    %884 = vmatpush.msra.mxu0 0.0
    %885 = vmatpush.msra.mxu0 0.0
    %886 = vmatpush.msra.mxu0 0.0
    %887 = vmatpush.msra.mxu0 0.0
    %888 = vmatpush.msra.mxu0 0.0
    %889 = vmatpush.msra.mxu0 0.0
    %890 = vmatpush.msra.mxu0 0.0
    %891 = vmatpush.msra.mxu0 0.0
    %892 = vmatpush.msra.mxu0 0.0
    %893 = vmatpush.msra.mxu0 0.0
    %894 = vmatpush.msra.mxu0 0.0
    %895 = vmatpush.msra.mxu0 0.0
    %896 = vmatpush.msra.mxu0 0.0
    %897 = vmatpush.msra.mxu0 %v878
    %898 = vmatmul.f32.gmra.mxu0 %v880
    %v899 = vpop.f32.mrf.mxu0
    %v900 = vadd.f32 0.0, %v899
    %901 = vdwg.mxu0
    %v902 = vadd.f32 %v799, %v900
    %903 = vst.msk [vmem:[#allocation2 + $0x8] sm:$0xff] %vm25, %v902
    // Predicated region
    $region14: #{tpu_custom_call.1} parent=1 // pred_check
      _
    $region15: #{tpu_custom_call.1} parent=1 // pred_check_branch
      %905 = sbr.rel (0) target = $region17
    $region16: #{tpu_custom_call.1} parent=1 // pred_region
      %907 = vsyncadd [#allocation3], 0
      %s908 = sshll.u32 [#allocation2], 4
      %s909 = int_to_ptr.vmem [resolvable:$true] %s908
      %s910 = sshll.u32 %s3, 4
      %s911 = int_to_ptr.hbm [resolvable:$true] %s910
      %916 = dma.vmem_to_hbm [thread:$0]  %s909, 256, %s911, [#allocation3], 128, 128, 8
    $region17: #{tpu_custom_call.1} parent=1 // pred_fallthru
      _
    // Predicated region
    $region18: #{tpu_custom_call.1} parent=1 // pred_check
      _
    $region19: #{tpu_custom_call.1} parent=1 // pred_check_branch
      %918 = sbr.rel (0) target = $region21
    $region20: #{tpu_custom_call.1} parent=1 // pred_region
      %920 = dma.done [#allocation3], 256
    $region21: #{tpu_custom_call.1} parent=1 // pred_fallthru
      _
    %921 = vsyncpa [#allocation3], 1

</llo_original>
